<compile_context>
chip_gen: v6e
topology: v6e:2x2x1
jax: 0.10.0
libtpu: 0.0.40
codegen_flags: <defaults>
</compile_context>

<pallas_src>
import functools

import jax
import jax.numpy as jnp
from jax.experimental import pallas as pl
from jax.experimental.pallas import tpu as pltpu


def _vmem_capacity_bytes():
    """Best-effort per-core VMEM capacity; conservative fallback (v7x = 64 MiB)."""
    try:
        info = pltpu.get_tpu_info()
        cap = getattr(info, "vmem_capacity_bytes", None)
        if cap:
            return int(cap)
    except Exception:
        pass
    return 64 * 1024 * 1024


def _instance_norm_kernel(x_ref, o_ref, *, eps, inv_hw, hw_valid):
    # x_ref: (rpb, hw_pad) tile in VMEM; each row is one (n, c) instance.
    x = x_ref[...].astype(jnp.float32)
    hw_pad = x.shape[1]

    # Per-instance mean. Padded lanes/rows are zero, so sum(x) is already
    # exact; divide by the true H*W via a precomputed reciprocal.
    mean = jnp.sum(x, axis=1, keepdims=True) * inv_hw
    xc = x - mean

    if hw_valid != hw_pad:
        # Padded lanes hold -mean after centering; mask them out of the
        # variance so numerics match the unpadded centered variance exactly.
        lane = jax.lax.broadcasted_iota(jnp.int32, x.shape, dimension=1)
        sq = jnp.where(lane < hw_valid, xc * xc, 0.0)
    else:
        sq = xc * xc

    var = jnp.sum(sq, axis=1, keepdims=True) * inv_hw
    inv_std = jax.lax.rsqrt(var + eps)  # EUP rsqrt

    # Full-width (lane-dense) store; padded region is sliced off in the wrapper.
    o_ref[...] = (xc * inv_std).astype(o_ref.dtype)


def instance_norm(x, eps=1e-8):
    """x: (N, C, H, W) -> (N, C, H, W), instance-normalized over (H, W)."""
    N, C, H, W = x.shape
    rows = N * C
    hw = H * W
    dsize = jnp.dtype(x.dtype).itemsize

    # Sublane packing multiple for the row (second-to-last) dim.
    if dsize >= 4:
        row_mult = 8
    elif dsize == 2:
        row_mult = 16
    else:
        row_mult = 32

    # Lane-dense last dim: pad H*W up to a multiple of 128.
    hw_pad = pl.cdiv(hw, 128) * 128

    # ---- Tile sizing from per-generation VMEM budget -------------------------
    vmem_cap = _vmem_capacity_bytes()
    usable = int(vmem_cap * 0.75)
    # Per grid step: in-tile + out-tile, each double-buffered (x4 tiles in the
    # input dtype) plus roughly one f32-tile's worth of intermediates. Budget
    # conservatively with a /6 of usable VMEM; 4 MiB tiles already sit on the
    # HBM-roofline plateau, so no need to go bigger than that.
    max_tile_bytes = max(row_mult * hw_pad * dsize, usable // 6)
    target_tile_bytes = min(4 * 1024 * 1024, max_tile_bytes)

    rows_pad = pl.cdiv(rows, row_mult) * row_mult

    rpb = target_tile_bytes // (hw_pad * dsize)
    rpb = (rpb // row_mult) * row_mult
    rpb = max(row_mult, min(rpb, rows_pad))
    # Keep at least 2 grid steps when there are enough rows (v7x: 2 TCs).
    if rows_pad >= 2 * row_mult and rpb > rows_pad // 2:
        rpb = max(row_mult, ((rows_pad // 2) // row_mult) * row_mult)
    # Make the padded row count an exact multiple of the block size.
    rows_pad = pl.cdiv(rows, rpb) * rpb
    grid = (rows_pad // rpb,)

    # ---- Prepare padded 2D view ----------------------------------------------
    x2d = x.reshape(rows, hw)
    if rows_pad != rows or hw_pad != hw:
        x2d = jnp.pad(x2d, ((0, rows_pad - rows), (0, hw_pad - hw)))

    # ---- VMEM limit: in + out double-buffered + f32 intermediates + headroom --
    tile_bytes = rpb * hw_pad * dsize
    tile_bytes_f32 = rpb * hw_pad * 4
    vmem_limit = 4 * tile_bytes + 2 * tile_bytes_f32 + (4 << 20)
    vmem_limit = min(int(vmem_cap * 0.9), max(vmem_limit, 32 << 20))

    kernel = functools.partial(
        _instance_norm_kernel,
        eps=float(eps),
        inv_hw=float(1.0 / hw),
        hw_valid=hw,
    )

    out2d = pl.pallas_call(
        kernel,
        out_shape=jax.ShapeDtypeStruct((rows_pad, hw_pad), x.dtype),
        grid_spec=pltpu.PrefetchScalarGridSpec(
            num_scalar_prefetch=0,
            grid=grid,
            in_specs=[pl.BlockSpec((rpb, hw_pad), lambda i: (i, 0))],
            out_specs=pl.BlockSpec((rpb, hw_pad), lambda i: (i, 0)),
        ),
        compiler_params=pltpu.CompilerParams(
            dimension_semantics=("parallel",),
            vmem_limit_bytes=int(vmem_limit),
        ),
    )(x2d)

    return out2d[:rows, :hw].reshape(N, C, H, W)


def _reference(x, eps=1e-8):
    xf = x.astype(jnp.float32)
    mean = jnp.mean(xf, axis=(2, 3), keepdims=True)
    xc = xf - mean
    var = jnp.mean(xc * xc, axis=(2, 3), keepdims=True)
    return (xc * jax.lax.rsqrt(var + eps)).astype(x.dtype)


if __name__ == "__main__":
    key = jax.random.PRNGKey(0)
    x = jax.random.normal(key, (2, 4, 16, 16), dtype=jnp.float32)

    out = instance_norm(x, eps=1e-8)
    out = jax.block_until_ready(out)

    ref = _reference(x, eps=1e-8)
    assert out.shape == x.shape and out.dtype == x.dtype
    assert jnp.allclose(out, ref, atol=1e-5, rtol=1e-5)

    # Extra check on a shape whose rows / spatial dims are NOT tile-aligned
    # (N*C = 3, H*W = 15*15 = 225) to exercise the padding + masked-variance path.
    x2 = jax.random.normal(jax.random.PRNGKey(1), (1, 3, 15, 15), dtype=jnp.float32)
    out2 = jax.block_until_ready(instance_norm(x2, eps=1e-8))
    assert jnp.allclose(out2, _reference(x2, eps=1e-8), atol=1e-5, rtol=1e-5)

    print("KERNEL_OK")
</pallas_src>

<mosaic_0001>
module attributes {stable_mosaic.version = 11 : i64} {
  func.func @_instance_norm_kernel(%arg0: i32, %arg1: memref<8x256xf32, #tpu.memory_space<vmem>>, %arg2: memref<8x256xf32, #tpu.memory_space<vmem>>) attributes {dimension_semantics = [#tpu.dimension_semantics<parallel>], iteration_bounds = array<i64: 1>, scalar_prefetch = 0 : i64, scratch_operands = 0 : i64, tpu.core_type = #tpu.core_type<tc>, window_params = [{transform_indices = @transform_0, window_bounds = array<i64: 8, 256>}, {transform_indices = @transform_1, window_bounds = array<i64: 8, 256>}]} {
    %c0 = arith.constant 0 : index
    %c0_0 = arith.constant 0 : index
    %0 = vector.load %arg1[%c0, %c0_0] : memref<8x256xf32, #tpu.memory_space<vmem>>, vector<8x256xf32>
    %cst = arith.constant dense<0.000000e+00> : vector<8xf32>
    %1 = vector.multi_reduction <add>, %0, %cst [1] : vector<8x256xf32> to vector<8xf32>
    %2 = vector.shape_cast %1 : vector<8xf32> to vector<8x1xf32>
    %cst_1 = arith.constant 3.906250e-03 : f32
    %3 = vector.broadcast %cst_1 : f32 to vector<8x1xf32>
    %4 = arith.mulf %2, %3 : vector<8x1xf32>
    %5 = vector.broadcast %4 : vector<8x1xf32> to vector<8x256xf32>
    %6 = arith.subf %0, %5 : vector<8x256xf32>
    %7 = arith.mulf %6, %6 : vector<8x256xf32>
    %cst_2 = arith.constant dense<0.000000e+00> : vector<8xf32>
    %8 = vector.multi_reduction <add>, %7, %cst_2 [1] : vector<8x256xf32> to vector<8xf32>
    %9 = vector.shape_cast %8 : vector<8xf32> to vector<8x1xf32>
    %cst_3 = arith.constant 3.906250e-03 : f32
    %10 = vector.broadcast %cst_3 : f32 to vector<8x1xf32>
    %11 = arith.mulf %9, %10 : vector<8x1xf32>
    %cst_4 = arith.constant 9.99999993E-9 : f32
    %12 = vector.broadcast %cst_4 : f32 to vector<8x1xf32>
    %13 = arith.addf %11, %12 : vector<8x1xf32>
    %14 = math.rsqrt %13 : vector<8x1xf32>
    %15 = vector.broadcast %14 : vector<8x1xf32> to vector<8x256xf32>
    %16 = arith.mulf %6, %15 : vector<8x256xf32>
    %c0_5 = arith.constant 0 : index
    %c0_6 = arith.constant 0 : index
    %17 = vector.load %arg2[%c0_5, %c0_6] : memref<8x256xf32, #tpu.memory_space<vmem>>, vector<8x256xf32>
    tpu.vector_store %arg2[%c0_5, %c0_6], %16 {strides = array<i32>} : memref<8x256xf32, #tpu.memory_space<vmem>>, vector<8x256xf32>,
    return
  }
  func.func @transform_0(%arg0: i32) -> (i32, i32) {
    %c0_i32 = arith.constant 0 : i32
    %c0_i32_0 = arith.constant 0 : i32
    return %arg0, %c0_i32 : i32, i32
  }
  func.func @transform_1(%arg0: i32) -> (i32, i32) {
    %c0_i32 = arith.constant 0 : i32
    %c0_i32_0 = arith.constant 0 : i32
    return %arg0, %c0_i32 : i32, i32
  }
}

</mosaic_0001>

<llo_original>
// kernel: tpu_custom_call.1
$region0: #{tpu_custom_call.1}
  #allocation0 [shape = 'u32[]', space=smem, size = 0x4, offset = 0x4, fixed_abs, tag = 'smem constant byte address 0x4 - core index']
  #allocation1 [shape = 'u32[144,128]{1,0:T(1,128)}', space=vmem, size = 0x12000, scoped, tag = 'internal scratch']
  %s0 = inlined_call_operand.hbm [shape: f32[8,256], index: 0, kind: input, shape index: {}]
  %s1 = inlined_call_operand.hbm [shape: f32[8,256], index: 1, kind: output, shape index: {}]
  %s2 = sld [smem:[#allocation0]]
  $region18: #{tpu_custom_call.1} parent=0
    _
  %s4 = ssub.s32 1, %s2
  %s5 = scalar_select 0, %s4, %s2
  $region1: #{tpu_custom_call.1} parent=0
    #allocation2 [shape = 'u8[8192]{0}', space=vmem, size = 0x2000, scoped, tag = 'input window, operand 0, single buffered']
    #allocation3 [shape = 's32[1]{0}', space=sflag, size = 0x4, scoped, tag = 'scoped memory for tpu_custom_call.1']
    #allocation4 [shape = 's32[1]{0}', space=sflag, size = 0x4, scoped, tag = 'scoped memory for tpu_custom_call.1']
    #allocation5 [shape = 'u8[8192]{0}', space=vmem, size = 0x2000, scoped, tag = 'output window, operand 0, single buffered']
    %6 = vsyncpa [#allocation3], 0
    %7 = vsyncpa [#allocation4], 0
    // Predicated region
    $region2: #{tpu_custom_call.1} parent=1 // pred_check
      _
    $region3: #{tpu_custom_call.1} parent=1 // pred_check_branch
      %9 = sbr.rel (0) target = $region5
    $region4: #{tpu_custom_call.1} parent=1 // pred_region
      %s11 = ssub.s32 256, 256
      %12 = vsyncadd [#allocation3], %s11
      %s14 = sshll.u32 [#allocation2], 4
      %s15 = int_to_ptr.vmem [resolvable:$true] %s14
      %17 = dma.hbm_to_vmem [thread:$0]  %s0, 256, %s15, [#allocation3]
    $region5: #{tpu_custom_call.1} parent=1 // pred_fallthru
      _
    // Predicated region
    $region6: #{tpu_custom_call.1} parent=1 // pred_check
      _
    $region7: #{tpu_custom_call.1} parent=1 // pred_check_branch
      %19 = sbr.rel (0) target = $region9
    $region8: #{tpu_custom_call.1} parent=1 // pred_region
      %20 = dma.done [#allocation3], 256
    $region9: #{tpu_custom_call.1} parent=1 // pred_fallthru
      _
    %v21 = vld [vmem:[#allocation2] sm:$0xff]
    %v22 = vld [vmem:[#allocation2 + $0x8] sm:$0xff]
    %v23 = vadd.f32 %v21, %v22
    %24 = vadd.xlane.f32.xlu0 %v23
    %v25 = vpop.xlane.xlu0 %24
    %v26 = vmul.f32 %v25, 0.00390625
    %v27 = vsub.f32 %v21, %v26
    %v28 = vsub.f32 %v22, %v26
    %v29 = vmul.f32 %v27, %v27
    %v30 = vmul.f32 %v28, %v28
    %v31 = vadd.f32 %v29, %v30
    %32 = vadd.xlane.f32.xlu0 %v31
    %v33 = vpop.xlane.xlu0 %32
    %v34 = vmul.f32 %v33, 0.00390625
    %v35 = vadd.f32 %v34, 1e-08
    %v36 = vrsqrt.pop %v35
    %v37 = vmul.f32 %v27, %v36
    %v38 = vmul.f32 %v28, %v36
    %39 = vst [vmem:[#allocation5] sm:$0xff] %v37
    %40 = vst [vmem:[#allocation5 + $0x8] sm:$0xff] %v38
    // Predicated region
    $region10: #{tpu_custom_call.1} parent=1 // pred_check
      _
    $region11: #{tpu_custom_call.1} parent=1 // pred_check_branch
      %42 = sbr.rel (0) target = $region13
    $region12: #{tpu_custom_call.1} parent=1 // pred_region
      %s44 = ssub.s32 256, 256
      %45 = vsyncadd [#allocation4], %s44
      %s47 = sshll.u32 [#allocation5], 4
      %s48 = int_to_ptr.vmem [resolvable:$true] %s47
      %50 = dma.vmem_to_hbm [thread:$0]  %s48, 256, %s1, [#allocation4]
    $region13: #{tpu_custom_call.1} parent=1 // pred_fallthru
      _
    // Predicated region
    $region14: #{tpu_custom_call.1} parent=1 // pred_check
      _
    $region15: #{tpu_custom_call.1} parent=1 // pred_check_branch
      %52 = sbr.rel (0) target = $region17
    $region16: #{tpu_custom_call.1} parent=1 // pred_region
      %53 = dma.done [#allocation4], 256
    $region17: #{tpu_custom_call.1} parent=1 // pred_fallthru
      _
    %54 = vsyncpa [#allocation3], 1
    %55 = vsyncpa [#allocation4], 1

</llo_original>
